<compile_context>
chip_gen: v7x
topology: tpu7x:2x2x1
jax: 0.10.0
libtpu: 0.0.40
codegen_flags: <defaults>
</compile_context>

<pallas_src>
import jax
import jax.numpy as jnp
from jax.experimental import pallas as pl
from jax.experimental.pallas import tpu as pltpu


def _mhca_attn_kernel(q_ref, kt_ref, v_ref, wp_ref, bp_ref, o_ref, acc_ref):
    """One (batch, q-tile, head) step: scores -> softmax -> P@V -> fused
    per-head output projection accumulated over the head grid axis."""
    h = pl.program_id(2)
    n_h = pl.num_programs(2)

    @pl.when(h == 0)
    def _init():
        acc_ref[...] = jnp.zeros_like(acc_ref)

    q = q_ref[0, 0]        # (TQ, hd)  -- scale already folded in
    kt = kt_ref[0, 0]      # (hd, N2)  -- pre-transposed in the wrapper
    v = v_ref[0, 0]        # (N2, hd)
    cdt = q.dtype          # MXU feed dtype (bf16 if requested / inputs bf16)

    # Scores: plain matmul, f32 accumulation on the MXU.
    s = jnp.dot(q, kt, preferred_element_type=jnp.float32)            # (TQ, N2)

    # Numerically-stable softmax along keys; denominator via EUP reciprocal.
    s_max = jnp.max(s, axis=-1, keepdims=True)
    p = jnp.exp(s - s_max)
    denom = jnp.sum(p, axis=-1, keepdims=True)
    attn = p * pl.reciprocal(denom, approx=True)                       # (TQ, N2)

    wavg = jnp.dot(attn.astype(cdt), v,
                   preferred_element_type=jnp.float32)                 # (TQ, hd)

    # Fused per-head output projection; wp_ref is a single resident block of
    # shape (H, hd, D) (fetched once per launch), indexed by head here.
    acc_ref[...] += jnp.dot(wavg.astype(cdt), wp_ref[h],
                            preferred_element_type=jnp.float32)        # (TQ, D)

    @pl.when(h == n_h - 1)
    def _finalize():
        o_ref[0] = (acc_ref[...] + bp_ref[...]).astype(o_ref.dtype)


def _round_up(x, m):
    return (x + m - 1) // m * m


def _choose_q_tile(n1, batch, cap=256):
    """Query tile: multiple of 16, <= cap; with B == 1 ensure >= 2 q-tiles so
    both TensorCores on v7x have parallel blocks. (On v6e a cap of 512 is also
    reasonable given 128 MiB VMEM.)"""
    tq = min(cap, _round_up(n1, 16))
    if batch == 1 and n1 > 16 and _round_up(n1, tq) // tq < 2:
        tq = _round_up((n1 + 1) // 2, 16)
    return tq


def multi_head_cross_attention(x1, x2, w_q, b_q, w_kv, b_kv, w_proj, b_proj,
                               n_heads, *, q_tile_cap=256, compute_dtype=None):
    """x1: (B, N1, D) queries; x2: (B, N2, D) keys/values.
    Weights follow nn.Linear (out_features, in_features), y = x @ W.T + b:
      w_q: (D, D), b_q: (D,); w_kv: (2D, D), b_kv: (2D,);
      w_proj: (D, D), b_proj: (D,).
    compute_dtype: MXU feed dtype inside the kernel (default: input dtype).
    """
    B, N1, D = x1.shape
    B2, N2, D2 = x2.shape
    if D != D2 or B != B2:
        raise ValueError("x1/x2 batch or embedding-dim mismatch")
    if D % n_heads != 0:
        raise ValueError("dim must be divisible by n_heads")
    H = n_heads
    hd = D // H
    scale = hd ** (-0.5)
    out_dtype = x1.dtype
    cdt = x1.dtype if compute_dtype is None else compute_dtype

    # ---- one-time, full-width projections + head-major rearrangement ----
    # (hoisted out of the grid: no per-(q-tile, head) recompute; full MXU width)
    q = (x1 @ w_q.T + b_q) * scale                       # scale folded into Q
    kv = x2 @ w_kv.T + b_kv                              # (B, N2, 2D)
    k, v = kv[..., :D], kv[..., D:]

    q_r = q.reshape(B, N1, H, hd).transpose(0, 2, 1, 3)      # (B, H, N1, hd)
    kt_r = k.reshape(B, N2, H, hd).transpose(0, 2, 3, 1)     # (B, H, hd, N2)
    v_r = v.reshape(B, N2, H, hd).transpose(0, 2, 1, 3)      # (B, H, N2, hd)
    wp_r = w_proj.T.reshape(H, hd, D)                        # (H, hd, D)
    bp_r = b_proj.astype(jnp.float32).reshape(1, D)

    q_r = q_r.astype(cdt)
    kt_r = kt_r.astype(cdt)
    v_r = v_r.astype(cdt)
    wp_r = wp_r.astype(cdt)

    # ---- query tiling (pad N1 to a whole number of tiles) ----
    TQ = _choose_q_tile(N1, B, q_tile_cap)
    N1p = _round_up(N1, TQ)
    if N1p != N1:
        q_r = jnp.pad(q_r, ((0, 0), (0, 0), (0, N1p - N1), (0, 0)))
    n_qt = N1p // TQ

    out = pl.pallas_call(
        _mhca_attn_kernel,
        out_shape=jax.ShapeDtypeStruct((B, N1p, D), out_dtype),
        grid_spec=pltpu.PrefetchScalarGridSpec(
            num_scalar_prefetch=0,
            grid=(B, n_qt, H),                       # head axis innermost
            in_specs=[
                # per-head activations (change with the grid -> pipelined)
                pl.BlockSpec((1, 1, TQ, hd), lambda b, qi, h: (b, h, qi, 0)),  # Q
                pl.BlockSpec((1, 1, hd, N2), lambda b, qi, h: (b, h, 0, 0)),   # K^T
                pl.BlockSpec((1, 1, N2, hd), lambda b, qi, h: (b, h, 0, 0)),   # V
                # resident weights: whole array, constant index -> DMA'd once
                pl.BlockSpec((H, hd, D), lambda b, qi, h: (0, 0, 0)),          # Wproj
                pl.BlockSpec((1, D), lambda b, qi, h: (0, 0)),                 # bproj
            ],
            out_specs=pl.BlockSpec((1, TQ, D), lambda b, qi, h: (b, qi, 0)),
            scratch_shapes=[pltpu.VMEM((TQ, D), jnp.float32)],
        ),
        compiler_params=pltpu.CompilerParams(
            dimension_semantics=("parallel", "parallel", "arbitrary"),
            vmem_limit_bytes=64 * 1024 * 1024),
    )(q_r, kt_r, v_r, wp_r, bp_r)

    return out[:, :N1, :] if N1p != N1 else out


def _reference(x1, x2, w_q, b_q, w_kv, b_kv, w_proj, b_proj, n_heads):
    """Pure-JAX reference mirroring the PyTorch forward (dropout p=0)."""
    B, N1, D = x1.shape
    _, N2, _ = x2.shape
    hd = D // n_heads
    scale = hd ** (-0.5)
    q = (x1 @ w_q.T + b_q).reshape(B, N1, n_heads, hd)
    q = jnp.transpose(q, (0, 2, 1, 3))                                 # (B, H, N1, hd)
    kv = (x2 @ w_kv.T + b_kv).reshape(B, N2, 2, n_heads, hd)
    kv = jnp.transpose(kv, (2, 0, 3, 1, 4))                            # (2, B, H, N2, hd)
    k, v = kv[0], kv[1]
    dp = jnp.einsum('bhqd,bhkd->bhqk', q, k) * scale
    attn = jax.nn.softmax(dp, axis=-1)
    wavg = jnp.einsum('bhqk,bhkd->bhqd', attn, v)                      # (B, H, N1, hd)
    wavg = jnp.transpose(wavg, (0, 2, 1, 3)).reshape(B, N1, D)
    return wavg @ w_proj.T + b_proj


if __name__ == "__main__":
    # Small shapes consistent with the module: batch=2, seq_q=8, seq_kv=16,
    # dim=32, heads=4 (head_dim=8).
    B, N1, N2, DIM, HEADS = 2, 8, 16, 32, 4

    key = jax.random.PRNGKey(0)
    k_x1, k_x2, k_wq, k_bq, k_wkv, k_bkv, k_wp, k_bp = jax.random.split(key, 8)

    x1 = jax.random.normal(k_x1, (B, N1, DIM), dtype=jnp.float32)
    x2 = jax.random.normal(k_x2, (B, N2, DIM), dtype=jnp.float32)
    w_q = 0.02 * jax.random.normal(k_wq, (DIM, DIM), dtype=jnp.float32)
    b_q = 0.01 * jax.random.normal(k_bq, (DIM,), dtype=jnp.float32)
    w_kv = 0.02 * jax.random.normal(k_wkv, (2 * DIM, DIM), dtype=jnp.float32)
    b_kv = 0.01 * jax.random.normal(k_bkv, (2 * DIM,), dtype=jnp.float32)
    w_proj = 0.02 * jax.random.normal(k_wp, (DIM, DIM), dtype=jnp.float32)
    b_proj = 0.01 * jax.random.normal(k_bp, (DIM,), dtype=jnp.float32)

    ref = _reference(x1, x2, w_q, b_q, w_kv, b_kv, w_proj, b_proj, HEADS)

    # 1) full-precision path (MXU fed in the input dtype, f32 here).
    out = multi_head_cross_attention(
        x1, x2, w_q, b_q, w_kv, b_kv, w_proj, b_proj, HEADS)
    out = jax.block_until_ready(out)
    assert out.shape == (B, N1, DIM)
    # approx=True reciprocal in the softmax => slightly loosened tolerance.
    assert jnp.allclose(out, ref, atol=5e-4, rtol=5e-4), "mismatch vs reference (f32)"

    # 2) fast path: bf16 MXU feeds with f32 accumulation.
    out_bf16 = multi_head_cross_attention(
        x1, x2, w_q, b_q, w_kv, b_kv, w_proj, b_proj, HEADS,
        compute_dtype=jnp.bfloat16)
    out_bf16 = jax.block_until_ready(out_bf16)
    assert jnp.allclose(out_bf16, ref, atol=2e-2, rtol=2e-2), "mismatch vs reference (bf16)"

    print("KERNEL_OK")
</pallas_src>

<mosaic_0001>
module attributes {stable_mosaic.version = 11 : i64} {
  func.func @_mhca_attn_kernel(%arg0: i32, %arg1: i32, %arg2: i32, %arg3: memref<1x1x16x8xf32, #tpu.memory_space<vmem>>, %arg4: memref<1x1x8x16xf32, #tpu.memory_space<vmem>>, %arg5: memref<1x1x16x8xf32, #tpu.memory_space<vmem>>, %arg6: memref<4x8x32xf32, #tpu.memory_space<vmem>>, %arg7: memref<1x32xf32, #tpu.memory_space<vmem>>, %arg8: memref<1x16x32xf32, #tpu.memory_space<vmem>>, %arg9: memref<16x32xf32, #tpu.memory_space<vmem>>) attributes {dimension_semantics = [#tpu.dimension_semantics<parallel>, #tpu.dimension_semantics<parallel>, #tpu.dimension_semantics<arbitrary>], iteration_bounds = array<i64: 2, 1, 4>, scalar_prefetch = 0 : i64, scratch_operands = 1 : i64, tpu.core_type = #tpu.core_type<tc>, window_params = [{transform_indices = @transform_0, window_bounds = array<i64: 1, 1, 16, 8>}, {transform_indices = @transform_1, window_bounds = array<i64: 1, 1, 8, 16>}, {transform_indices = @transform_2, window_bounds = array<i64: 1, 1, 16, 8>}, {pipeline_mode = #tpu.pipeline_mode<synchronous>, transform_indices = @transform_3, window_bounds = array<i64: 4, 8, 32>}, {pipeline_mode = #tpu.pipeline_mode<synchronous>, transform_indices = @transform_4, window_bounds = array<i64: 1, 32>}, {transform_indices = @transform_5, window_bounds = array<i64: 1, 16, 32>}]} {
    %c0_i32 = arith.constant 0 : i32
    %0 = arith.cmpi eq, %arg2, %c0_i32 : i32
    %1 = arith.extui %0 : i1 to i32
    %c0_i32_0 = arith.constant 0 : i32
    %2 = arith.cmpi ne, %1, %c0_i32_0 : i32
    scf.if %2 {
      %cst_23 = arith.constant 0.000000e+00 : f32
      %31 = vector.broadcast %cst_23 : f32 to vector<16x32xf32>
      %c0_24 = arith.constant 0 : index
      %c0_25 = arith.constant 0 : index
      %32 = vector.load %arg9[%c0_24, %c0_25] : memref<16x32xf32, #tpu.memory_space<vmem>>, vector<16x32xf32>
      tpu.vector_store %arg9[%c0_24, %c0_25], %31 {strides = array<i32>} : memref<16x32xf32, #tpu.memory_space<vmem>>, vector<16x32xf32>,
    } else {
    }
    %c0 = arith.constant 0 : index
    %c0_1 = arith.constant 0 : index
    %c0_2 = arith.constant 0 : index
    %c0_3 = arith.constant 0 : index
    %3 = vector.load %arg3[%c0, %c0_1, %c0_2, %c0_3] : memref<1x1x16x8xf32, #tpu.memory_space<vmem>>, vector<1x1x16x8xf32>
    %4 = vector.shape_cast %3 : vector<1x1x16x8xf32> to vector<16x8xf32>
    %c0_4 = arith.constant 0 : index
    %c0_5 = arith.constant 0 : index
    %c0_6 = arith.constant 0 : index
    %c0_7 = arith.constant 0 : index
    %5 = vector.load %arg4[%c0_4, %c0_5, %c0_6, %c0_7] : memref<1x1x8x16xf32, #tpu.memory_space<vmem>>, vector<1x1x8x16xf32>
    %6 = vector.shape_cast %5 : vector<1x1x8x16xf32> to vector<8x16xf32>
    %c0_8 = arith.constant 0 : index
    %c0_9 = arith.constant 0 : index
    %c0_10 = arith.constant 0 : index
    %c0_11 = arith.constant 0 : index
    %7 = vector.load %arg5[%c0_8, %c0_9, %c0_10, %c0_11] : memref<1x1x16x8xf32, #tpu.memory_space<vmem>>, vector<1x1x16x8xf32>
    %8 = vector.shape_cast %7 : vector<1x1x16x8xf32> to vector<16x8xf32>
    %cst = arith.constant dense<0.000000e+00> : vector<16x16xf32>
    %9 = tpu.matmul %4, %6, %cst {dimension_numbers = #tpu.dot_dimension_numbers<[1], [0], [0], [1], [0, 0, 1, 1], [], []>} : vector<16x8xf32>, vector<8x16xf32>, vector<16x16xf32> -> vector<16x16xf32>
    %cst_12 = arith.constant dense<0xFF800000> : vector<16xf32>
    %10 = vector.multi_reduction <maximumf>, %9, %cst_12 [1] : vector<16x16xf32> to vector<16xf32>
    %11 = vector.shape_cast %10 : vector<16xf32> to vector<16x1xf32>
    %12 = vector.broadcast %11 : vector<16x1xf32> to vector<16x16xf32>
    %13 = arith.subf %9, %12 : vector<16x16xf32>
    %14 = math.exp %13 : vector<16x16xf32>
    %cst_13 = arith.constant dense<0.000000e+00> : vector<16xf32>
    %15 = vector.multi_reduction <add>, %14, %cst_13 [1] : vector<16x16xf32> to vector<16xf32>
    %16 = vector.shape_cast %15 : vector<16xf32> to vector<16x1xf32>
    %17 = tpu.reciprocal %16 {approx = true} : vector<16x1xf32> -> vector<16x1xf32>
    %18 = vector.broadcast %17 : vector<16x1xf32> to vector<16x16xf32>
    %19 = arith.mulf %14, %18 : vector<16x16xf32>
    %cst_14 = arith.constant dense<0.000000e+00> : vector<16x8xf32>
    %20 = tpu.matmul %19, %8, %cst_14 {dimension_numbers = #tpu.dot_dimension_numbers<[1], [0], [0], [1], [0, 0, 1, 1], [], []>} : vector<16x16xf32>, vector<16x8xf32>, vector<16x8xf32> -> vector<16x8xf32>
    %c0_15 = arith.constant 0 : index
    %c0_16 = arith.constant 0 : index
    %21 = vector.load %arg9[%c0_15, %c0_16] : memref<16x32xf32, #tpu.memory_space<vmem>>, vector<16x32xf32>
    %22 = arith.index_cast %arg2 : i32 to index
    %c0_17 = arith.constant 0 : index
    %c0_18 = arith.constant 0 : index
    %23 = vector.load %arg6[%22, %c0_17, %c0_18] : memref<4x8x32xf32, #tpu.memory_space<vmem>>, vector<1x8x32xf32>
    %24 = vector.shape_cast %23 : vector<1x8x32xf32> to vector<8x32xf32>
    %cst_19 = arith.constant dense<0.000000e+00> : vector<16x32xf32>
    %25 = tpu.matmul %20, %24, %cst_19 {dimension_numbers = #tpu.dot_dimension_numbers<[1], [0], [0], [1], [0, 0, 1, 1], [], []>} : vector<16x8xf32>, vector<8x32xf32>, vector<16x32xf32> -> vector<16x32xf32>
    %26 = arith.addf %21, %25 : vector<16x32xf32>
    %c0_20 = arith.constant 0 : index
    %c0_21 = arith.constant 0 : index
    %27 = vector.load %arg9[%c0_20, %c0_21] : memref<16x32xf32, #tpu.memory_space<vmem>>, vector<16x32xf32>
    tpu.vector_store %arg9[%c0_20, %c0_21], %26 {strides = array<i32>} : memref<16x32xf32, #tpu.memory_space<vmem>>, vector<16x32xf32>,
    %c3_i32 = arith.constant 3 : i32
    %28 = arith.cmpi eq, %arg2, %c3_i32 : i32
    %29 = arith.extui %28 : i1 to i32
    %c0_i32_22 = arith.constant 0 : i32
    %30 = arith.cmpi ne, %29, %c0_i32_22 : i32
    scf.if %30 {
      %c0_23 = arith.constant 0 : index
      %c0_24 = arith.constant 0 : index
      %31 = vector.load %arg9[%c0_23, %c0_24] : memref<16x32xf32, #tpu.memory_space<vmem>>, vector<16x32xf32>
      %c0_25 = arith.constant 0 : index
      %c0_26 = arith.constant 0 : index
      %32 = vector.load %arg7[%c0_25, %c0_26] : memref<1x32xf32, #tpu.memory_space<vmem>>, vector<1x32xf32>
      %33 = vector.broadcast %32 : vector<1x32xf32> to vector<16x32xf32>
      %34 = arith.addf %31, %33 : vector<16x32xf32>
      %c0_27 = arith.constant 0 : index
      %c0_28 = arith.constant 0 : index
      %c0_29 = arith.constant 0 : index
      %35 = vector.load %arg8[%c0_27, %c0_28, %c0_29] : memref<1x16x32xf32, #tpu.memory_space<vmem>>, vector<1x16x32xf32>
      %36 = vector.shape_cast %35 : vector<1x16x32xf32> to vector<16x32xf32>
      %37 = vector.shape_cast %34 : vector<16x32xf32> to vector<1x16x32xf32>
      tpu.vector_store %arg8[%c0_27, %c0_28, %c0_29], %37 {strides = array<i32>} : memref<1x16x32xf32, #tpu.memory_space<vmem>>, vector<1x16x32xf32>,
    } else {
    }
    return
  }
  func.func @transform_0(%arg0: i32, %arg1: i32, %arg2: i32) -> (i32, i32, i32, i32) {
    %c0_i32 = arith.constant 0 : i32
    %c0_i32_0 = arith.constant 0 : i32
    return %arg0, %arg2, %arg1, %c0_i32 : i32, i32, i32, i32
  }
  func.func @transform_1(%arg0: i32, %arg1: i32, %arg2: i32) -> (i32, i32, i32, i32) {
    %c0_i32 = arith.constant 0 : i32
    %c0_i32_0 = arith.constant 0 : i32
    %c0_i32_1 = arith.constant 0 : i32
    return %arg0, %arg2, %c0_i32, %c0_i32_0 : i32, i32, i32, i32
  }
  func.func @transform_2(%arg0: i32, %arg1: i32, %arg2: i32) -> (i32, i32, i32, i32) {
    %c0_i32 = arith.constant 0 : i32
    %c0_i32_0 = arith.constant 0 : i32
    %c0_i32_1 = arith.constant 0 : i32
    return %arg0, %arg2, %c0_i32, %c0_i32_0 : i32, i32, i32, i32
  }
  func.func @transform_3(%arg0: i32, %arg1: i32, %arg2: i32) -> (i32, i32, i32) {
    %c0_i32 = arith.constant 0 : i32
    %c0_i32_0 = arith.constant 0 : i32
    %c0_i32_1 = arith.constant 0 : i32
    %c0_i32_2 = arith.constant 0 : i32
    return %c0_i32, %c0_i32_0, %c0_i32_1 : i32, i32, i32
  }
  func.func @transform_4(%arg0: i32, %arg1: i32, %arg2: i32) -> (i32, i32) {
    %c0_i32 = arith.constant 0 : i32
    %c0_i32_0 = arith.constant 0 : i32
    %c0_i32_1 = arith.constant 0 : i32
    return %c0_i32, %c0_i32_0 : i32, i32
  }
  func.func @transform_5(%arg0: i32, %arg1: i32, %arg2: i32) -> (i32, i32, i32) {
    %c0_i32 = arith.constant 0 : i32
    %c0_i32_0 = arith.constant 0 : i32
    return %arg0, %arg1, %c0_i32 : i32, i32, i32
  }
}

</mosaic_0001>

<llo_original>
// kernel: tpu_custom_call.1
$region0: #{tpu_custom_call.1}
  #allocation0 [shape = 'u32[]', space=smem, size = 0x4, offset = 0x4, fixed_abs, tag = 'smem constant byte address 0x4 - core index']
  #allocation1 [shape = 'u32[144,128]{1,0:T(1,128)}', space=vmem, size = 0x12000, scoped, tag = 'internal scratch']
  #allocation2 [shape = 'f32[16,32]{1,0:T(8,128)}', space=vmem, size = 0x2000, scoped, tag = 'scratch operand']
  %s0 = inlined_call_operand.hbm [shape: f32[2,4,16,8], index: 0, kind: input, shape index: {}]
  %s1 = inlined_call_operand.hbm [shape: f32[2,4,8,16], index: 1, kind: input, shape index: {}]
  %s2 = inlined_call_operand.hbm [shape: f32[2,4,16,8], index: 2, kind: input, shape index: {}]
  %s3 = inlined_call_operand.hbm [shape: f32[4,8,32], index: 3, kind: input, shape index: {}]
  %s4 = inlined_call_operand.hbm [shape: f32[1,32], index: 4, kind: input, shape index: {}]
  %s5 = inlined_call_operand.hbm [shape: f32[2,16,32], index: 5, kind: output, shape index: {}]
  %s6 = sld [smem:[#allocation0]]
  $region81: #{tpu_custom_call.1} parent=0
    _
  %s8 = ssub.s32 1, %s6
  %s9 = scalar_select 0, %s8, %s6
  $region1: #{tpu_custom_call.1} parent=0
    #allocation3 [shape = 'u8[16384]{0}', space=vmem, size = 0x4000, scoped, tag = 'input window, operand 0']
    #allocation4 [shape = 's32[2]{0}', space=sflag, size = 0x8, scoped, tag = 'scoped memory for tpu_custom_call.1']
    #allocation5 [shape = 's32[2]{0}', space=sflag, size = 0x8, scoped, tag = 'scoped memory for tpu_custom_call.1']
    #allocation6 [shape = 'u8[8192]{0}', space=vmem, size = 0x2000, scoped, tag = 'input window, operand 1']
    #allocation7 [shape = 's32[2]{0}', space=sflag, size = 0x8, scoped, tag = 'scoped memory for tpu_custom_call.1']
    #allocation8 [shape = 'u8[16384]{0}', space=vmem, size = 0x4000, scoped, tag = 'input window, operand 2']
    #allocation9 [shape = 'u8[16384]{0}', space=vmem, size = 0x4000, scoped, tag = 'input window, operand 3, single buffered']
    #allocation10 [shape = 's32[1]{0}', space=sflag, size = 0x4, scoped, tag = 'scoped memory for tpu_custom_call.1']
    #allocation11 [shape = 'u8[512]{0}', space=vmem, size = 0x400, scoped, tag = 'input window, operand 4, single buffered']
    #allocation12 [shape = 'u8[16384]{0}', space=vmem, size = 0x4000, scoped, tag = 'output window, operand 0']
    %10 = vsyncpa [#allocation4], 0
    %s11 = scalar_lea.sflag [#allocation4], 1
    %12 = vsyncpa %s11, 0
    %13 = vsyncpa [#allocation7], 0
    %s14 = scalar_lea.sflag [#allocation7], 1
    %15 = vsyncpa %s14, 0
    %16 = vsyncpa [#allocation10], 0
    %17 = vsyncpa [#allocation5], 0
    %s18 = scalar_lea.sflag [#allocation5], 1
    %19 = vsyncpa %s18, 0
    loop: start=0, step=1, limit=10
    $region2: #{tpu_custom_call.1} parent=1 // loop_pre_header
      _
    $region3: #{tpu_custom_call.1} parent=1 // loop_header
      %s21 = sphi 0, %s25
      %p22 = scmp.ge.s32.totalorder %s21, 10
      %s28 = sphi 0, %s47
      %s29 = sphi 0, %s43
      %s30 = sphi 0, %s39
      %s31 = sphi 0, %s28
      %s32 = sphi 0, %s29
      %s33 = sphi 0, %s30
      %s34 = sphi 0, %s31
      %s35 = sphi 0, %s32
      %s36 = sphi 0, %s33
      %s54 = sphi 0, %s56
      %s57 = sphi 0, %s54
      %s58 = sphi 0, %s57
      %s74 = sphi 0, %s58
      %s82 = sphi 0, %s84
      %s85 = sphi 0, %s82
      %s86 = sphi 0, %s85
      %s102 = sphi 0, %s86
      %s110 = sphi 0, %s112
      %s113 = sphi 0, %s110
      %s114 = sphi 0, %s113
      %s130 = sphi 0, %s114
      %s134 = sphi 0, %s134
      %s136 = sphi 0, %s134
      %s137 = sphi 0, %s136
      %s151 = sphi 0, %s137
      %s155 = sphi 0, %s155
      %s157 = sphi 0, %s155
      %s158 = sphi 0, %s157
      %s172 = sphi 0, %s158
      %s180 = sphi 0, %s182
      %s183 = sphi 0, %s180
      %s184 = sphi 0, %s183
      %s200 = sphi 0, %s184
    $region4: #{tpu_custom_call.1} parent=1 // loop_header_branch
      %24 = sbr.rel (%p22) target = $region8
    $region5: #{tpu_custom_call.1} parent=1 // loop_body
      %s26 = ssub.s32 %s21, 1
      %s27 = ssub.s32 %s21, 2
      %s37 = sadd.s32 1, %s30
      %p38 = scmp.ge.s32.totalorder %s37, 4
      %s39 = scalar_select %p38, 0, %s37
      %s40 = sadd.s32 1, %s29
      %s41 = scalar_select %p38, %s40, %s29
      %p42 = scmp.ge.s32.totalorder %s41, 1
      %s43 = scalar_select %p42, 0, %s41
      %s44 = sadd.s32 1, %s28
      %s45 = scalar_select %p42, %s44, %s28
      %p46 = scmp.ge.s32.totalorder %s45, 2
      %s47 = scalar_select %p46, 0, %s45
      %s48 = ssub.s32 %s28, %s47
      %s49 = ssub.s32 %s30, %s39
      %s50 = sor.u32 %s48, %s49
      %s51 = ssub.s32 %s29, %s43
      %s52 = sor.u32 %s50, %s51
      %p53 = scmp.eq.s32.totalorder %s52, 0
      %s55 = sadd.s32 %s54, 1
      %s56 = scalar_select %p53, %s54, %s55
      %p59 = pneg %p53
      %p60 = scmp.eq.s32.totalorder %s21, 7
      %p61 = por %p59, %p60
      %p62 = scmp.ne.s32.totalorder %s54, %s57
      %p63 = scmp.eq.s32.totalorder %s21, 0
      %p64 = por %p62, %p63
      %p65 = scmp.ne.s32.totalorder %s54, %s57
      %p66 = scmp.eq.s32.totalorder %s26, 7
      %p67 = por %p65, %p66
      %p68 = scmp.ne.s32.totalorder %s57, %s58
      %p69 = scmp.eq.s32.totalorder %s26, 0
      %p70 = por %p68, %p69
      %p71 = scmp.ne.s32.totalorder %s57, %s58
      %p72 = scmp.eq.s32.totalorder %s27, 7
      %p73 = por %p71, %p72
      %p75 = scmp.ne.s32.totalorder %s58, %s74
      %p76 = scmp.eq.s32.totalorder %s27, 0
      %p77 = por %p75, %p76
      %s78 = ssub.s32 %s28, %s47
      %s79 = ssub.s32 %s30, %s39
      %s80 = sor.u32 %s78, %s79
      %p81 = scmp.eq.s32.totalorder %s80, 0
      %s83 = sadd.s32 %s82, 1
      %s84 = scalar_select %p81, %s82, %s83
      %p87 = pneg %p81
      %p88 = scmp.eq.s32.totalorder %s21, 7
      %p89 = por %p87, %p88
      %p90 = scmp.ne.s32.totalorder %s82, %s85
      %p91 = scmp.eq.s32.totalorder %s21, 0
      %p92 = por %p90, %p91
      %p93 = scmp.ne.s32.totalorder %s82, %s85
      %p94 = scmp.eq.s32.totalorder %s26, 7
      %p95 = por %p93, %p94
      %p96 = scmp.ne.s32.totalorder %s85, %s86
      %p97 = scmp.eq.s32.totalorder %s26, 0
      %p98 = por %p96, %p97
      %p99 = scmp.ne.s32.totalorder %s85, %s86
      %p100 = scmp.eq.s32.totalorder %s27, 7
      %p101 = por %p99, %p100
      %p103 = scmp.ne.s32.totalorder %s86, %s102
      %p104 = scmp.eq.s32.totalorder %s27, 0
      %p105 = por %p103, %p104
      %s106 = ssub.s32 %s28, %s47
      %s107 = ssub.s32 %s30, %s39
      %s108 = sor.u32 %s106, %s107
      %p109 = scmp.eq.s32.totalorder %s108, 0
      %s111 = sadd.s32 %s110, 1
      %s112 = scalar_select %p109, %s110, %s111
      %p115 = pneg %p109
      %p116 = scmp.eq.s32.totalorder %s21, 7
      %p117 = por %p115, %p116
      %p118 = scmp.ne.s32.totalorder %s110, %s113
      %p119 = scmp.eq.s32.totalorder %s21, 0
      %p120 = por %p118, %p119
      %p121 = scmp.ne.s32.totalorder %s110, %s113
      %p122 = scmp.eq.s32.totalorder %s26, 7
      %p123 = por %p121, %p122
      %p124 = scmp.ne.s32.totalorder %s113, %s114
      %p125 = scmp.eq.s32.totalorder %s26, 0
      %p126 = por %p124, %p125
      %p127 = scmp.ne.s32.totalorder %s113, %s114
      %p128 = scmp.eq.s32.totalorder %s27, 7
      %p129 = por %p127, %p128
      %p131 = scmp.ne.s32.totalorder %s114, %s130
      %p132 = scmp.eq.s32.totalorder %s27, 0
      %p133 = por %p131, %p132
      %s135 = sadd.s32 %s134, 1
      %p138 = scmp.eq.s32.totalorder %s21, 7
      %p139 = scmp.ne.s32.totalorder %s134, %s136
      %p140 = scmp.eq.s32.totalorder %s21, 0
      %p141 = por %p139, %p140
      %p142 = scmp.ne.s32.totalorder %s134, %s136
      %p143 = scmp.eq.s32.totalorder %s26, 7
      %p144 = por %p142, %p143
      %p145 = scmp.ne.s32.totalorder %s136, %s137
      %p146 = scmp.eq.s32.totalorder %s26, 0
      %p147 = por %p145, %p146
      %p148 = scmp.ne.s32.totalorder %s136, %s137
      %p149 = scmp.eq.s32.totalorder %s27, 7
      %p150 = por %p148, %p149
      %p152 = scmp.ne.s32.totalorder %s137, %s151
      %p153 = scmp.eq.s32.totalorder %s27, 0
      %p154 = por %p152, %p153
      %s156 = sadd.s32 %s155, 1
      %p159 = scmp.eq.s32.totalorder %s21, 7
      %p160 = scmp.ne.s32.totalorder %s155, %s157
      %p161 = scmp.eq.s32.totalorder %s21, 0
      %p162 = por %p160, %p161
      %p163 = scmp.ne.s32.totalorder %s155, %s157
      %p164 = scmp.eq.s32.totalorder %s26, 7
      %p165 = por %p163, %p164
      %p166 = scmp.ne.s32.totalorder %s157, %s158
      %p167 = scmp.eq.s32.totalorder %s26, 0
      %p168 = por %p166, %p167
      %p169 = scmp.ne.s32.totalorder %s157, %s158
      %p170 = scmp.eq.s32.totalorder %s27, 7
      %p171 = por %p169, %p170
      %p173 = scmp.ne.s32.totalorder %s158, %s172
      %p174 = scmp.eq.s32.totalorder %s27, 0
      %p175 = por %p173, %p174
      %s176 = ssub.s32 %s28, %s47
      %s177 = ssub.s32 %s29, %s43
      %s178 = sor.u32 %s176, %s177
      %p179 = scmp.eq.s32.totalorder %s178, 0
      %s181 = sadd.s32 %s180, 1
      %s182 = scalar_select %p179, %s180, %s181
      %p185 = pneg %p179
      %p186 = scmp.eq.s32.totalorder %s21, 7
      %p187 = por %p185, %p186
      %p188 = scmp.ne.s32.totalorder %s180, %s183
      %p189 = scmp.eq.s32.totalorder %s21, 0
      %p190 = por %p188, %p189
      %p191 = scmp.ne.s32.totalorder %s180, %s183
      %p192 = scmp.eq.s32.totalorder %s26, 7
      %p193 = por %p191, %p192
      %p194 = scmp.ne.s32.totalorder %s183, %s184
      %p195 = scmp.eq.s32.totalorder %s26, 0
      %p196 = por %p194, %p195
      %p197 = scmp.ne.s32.totalorder %s183, %s184
      %p198 = scmp.eq.s32.totalorder %s27, 7
      %p199 = por %p197, %p198
      %p201 = scmp.ne.s32.totalorder %s184, %s200
      %p202 = scmp.eq.s32.totalorder %s27, 0
      %p203 = por %p201, %p202
      %p204 = scmp.le.s32.totalorder 1, %s21
      %p205 = scmp.lt.s32.totalorder %s21, 9
      %p206 = pnand %p204, %p205
      %p207 = pneg %p206
      // Predicated region
      $region9: #{tpu_custom_call.1} parent=5 // pred_check
        _
      $region10: #{tpu_custom_call.1} parent=5 // pred_check_branch
        %209 = sbr.rel (%p206) target = $region12
      $region11: #{tpu_custom_call.1} parent=5 // pred_region
        %s210 = ssub.s32 %s21, 1
        // Predicated region
        $region13: #{tpu_custom_call.1} parent=11 // pred_check
          %p211 = pneg %p147
        $region14: #{tpu_custom_call.1} parent=11 // pred_check_branch
          %213 = sbr.rel (%p211) target = $region16
        $region15: #{tpu_custom_call.1} parent=11 // pred_region
          %s215 = ssub.s32 512, 512
          %216 = vsyncadd [#allocation10], %s215
          %s217 = sshll.u32 [#allocation9], 4
          %s218 = int_to_ptr.vmem [resolvable:$true] %s217
          %223 = dma.hbm_to_vmem [thread:$0]  %s3, 512, %s218, [#allocation10], 128, 128, 8
        $region16: #{tpu_custom_call.1} parent=11 // pred_fallthru
          _
        // Predicated region
        $region17: #{tpu_custom_call.1} parent=11 // pred_check
          %p224 = pneg %p168
        $region18: #{tpu_custom_call.1} parent=11 // pred_check_branch
          %226 = sbr.rel (%p224) target = $region20
        $region19: #{tpu_custom_call.1} parent=11 // pred_region
          %s228 = ssub.s32 16, 16
          %229 = vsyncadd [#allocation10], %s228
          %s231 = sshll.u32 [#allocation11], 4
          %s232 = int_to_ptr.vmem [resolvable:$true] %s231
          %234 = dma.hbm_to_vmem [thread:$0]  %s4, 16, %s232, [#allocation10]
        $region20: #{tpu_custom_call.1} parent=11 // pred_fallthru
          _
      $region12: #{tpu_custom_call.1} parent=5 // pred_fallthru
        _
      %p235 = scmp.lt.s32.totalorder %s21, 8
      // Predicated region
      $region21: #{tpu_custom_call.1} parent=5 // pred_check
        %p236 = pneg %p235
      $region22: #{tpu_custom_call.1} parent=5 // pred_check_branch
        %238 = sbr.rel (%p236) target = $region24
      $region23: #{tpu_custom_call.1} parent=5 // pred_region
        // Predicated region
        $region25: #{tpu_custom_call.1} parent=23 // pred_check
          %p239 = pneg %p64
        $region26: #{tpu_custom_call.1} parent=23 // pred_check_branch
          %241 = sbr.rel (%p239) target = $region28
        $region27: #{tpu_custom_call.1} parent=23 // pred_region
          %s242 = sand.u32 %s54, 1
          %s243 = scalar_lea.sflag [#allocation4], %s242
          %s244 = sand.u32 %s54, 1
          %s245 = smul.addr %s244, 16
          %s246 = scalar_lea.vmem [#allocation3], %s245
          %s247 = smul.u32 2, %s29
          %s249 = ssub.s32 256, 256
          %250 = vsyncadd %s243, %s249
          %s251 = smul.addr %s30, 2
          %s252 = sadd.s32 %s247, %s251
          %s253 = smul.addr %s28, 8
          %s254 = sadd.s32 %s252, %s253
          %s255 = smul.addr %s254, 128
          %s256 = scalar_lea.hbm %s0, %s255
          %s257 = sshll.u32 %s246, 4
          %s258 = int_to_ptr.vmem [resolvable:$true] %s257
          %263 = dma.hbm_to_vmem [thread:$0]  %s256, 256, %s258, %s243, 128, 128, 8
        $region28: #{tpu_custom_call.1} parent=23 // pred_fallthru
          _
        // Predicated region
        $region29: #{tpu_custom_call.1} parent=23 // pred_check
          %p264 = pneg %p92
        $region30: #{tpu_custom_call.1} parent=23 // pred_check_branch
          %266 = sbr.rel (%p264) target = $region32
        $region31: #{tpu_custom_call.1} parent=23 // pred_region
          %s267 = sand.u32 %s21, 1
          %s268 = scalar_lea.sflag [#allocation7], %s267
          %s269 = sand.u32 %s82, 1
          %s270 = smul.addr %s269, 8
          %s271 = scalar_lea.vmem [#allocation6], %s270
          %s273 = ssub.s32 128, 128
          %274 = vsyncadd %s268, %s273
          %s275 = smul.addr %s28, 4
          %s276 = sadd.s32 %s30, %s275
          %s277 = smul.addr %s276, 128
          %s278 = scalar_lea.hbm %s1, %s277
          %s280 = sshll.u32 %s271, 4
          %s281 = int_to_ptr.vmem [resolvable:$true] %s280
          %283 = dma.hbm_to_vmem [thread:$0]  %s278, 128, %s281, %s268
        $region32: #{tpu_custom_call.1} parent=23 // pred_fallthru
          _
        // Predicated region
        $region33: #{tpu_custom_call.1} parent=23 // pred_check
          %p284 = pneg %p120
        $region34: #{tpu_custom_call.1} parent=23 // pred_check_branch
          %286 = sbr.rel (%p284) target = $region36
        $region35: #{tpu_custom_call.1} parent=23 // pred_region
          %s287 = sand.u32 %s21, 1
          %s288 = scalar_lea.sflag [#allocation7], %s287
          %s289 = sand.u32 %s110, 1
          %s290 = smul.addr %s289, 16
          %s291 = scalar_lea.vmem [#allocation8], %s290
          %s293 = ssub.s32 256, 256
          %294 = vsyncadd %s288, %s293
          %s295 = smul.addr %s30, 2
          %s296 = smul.addr %s28, 8
          %s297 = sadd.s32 %s295, %s296
          %s298 = smul.addr %s297, 128
          %s299 = scalar_lea.hbm %s2, %s298
          %s300 = sshll.u32 %s291, 4
          %s301 = int_to_ptr.vmem [resolvable:$true] %s300
          %306 = dma.hbm_to_vmem [thread:$0]  %s299, 256, %s301, %s288, 128, 128, 8
        $region36: #{tpu_custom_call.1} parent=23 // pred_fallthru
          _
      $region24: #{tpu_custom_call.1} parent=5 // pred_fallthru
        _
      %p307 = scmp.le.s32.totalorder 1, %s21
      %p308 = scmp.lt.s32.totalorder %s21, 9
      %p309 = pnand %p307, %p308
      %p310 = pneg %p309
      // Predicated region
      $region37: #{tpu_custom_call.1} parent=5 // pred_check
        _
      $region38: #{tpu_custom_call.1} parent=5 // pred_check_branch
        %312 = sbr.rel (%p309) target = $region40
      $region39: #{tpu_custom_call.1} parent=5 // pred_region
        %s313 = ssub.s32 %s21, 1
        %s314 = sand.u32 %s57, 1
        %s315 = scalar_lea.sflag [#allocation4], %s314
        %s316 = sand.u32 %s57, 1
        %s317 = smul.addr %s316, 16
        %s318 = scalar_lea.vmem [#allocation3], %s317
        // Predicated region
        $region41: #{tpu_custom_call.1} parent=39 // pred_check
          %p319 = pneg %p70
        $region42: #{tpu_custom_call.1} parent=39 // pred_check_branch
          %321 = sbr.rel (%p319) target = $region44
        $region43: #{tpu_custom_call.1} parent=39 // pred_region
          %322 = dma.done %s315, 256
        $region44: #{tpu_custom_call.1} parent=39 // pred_fallthru
          _
        %s323 = sand.u32 %s26, 1
        %s324 = scalar_lea.sflag [#allocation7], %s323
        %s325 = sand.u32 %s85, 1
        %s326 = smul.addr %s325, 8
        %s327 = scalar_lea.vmem [#allocation6], %s326
        // Predicated region
        $region45: #{tpu_custom_call.1} parent=39 // pred_check
          %p328 = pneg %p98
        $region46: #{tpu_custom_call.1} parent=39 // pred_check_branch
          %330 = sbr.rel (%p328) target = $region48
        $region47: #{tpu_custom_call.1} parent=39 // pred_region
          %331 = dma.done %s324, 128
        $region48: #{tpu_custom_call.1} parent=39 // pred_fallthru
          _
        %s332 = sand.u32 %s26, 1
        %s333 = scalar_lea.sflag [#allocation7], %s332
        %s334 = sand.u32 %s113, 1
        %s335 = smul.addr %s334, 16
        %s336 = scalar_lea.vmem [#allocation8], %s335
        // Predicated region
        $region49: #{tpu_custom_call.1} parent=39 // pred_check
          %p337 = pneg %p126
        $region50: #{tpu_custom_call.1} parent=39 // pred_check_branch
          %339 = sbr.rel (%p337) target = $region52
        $region51: #{tpu_custom_call.1} parent=39 // pred_region
          %340 = dma.done %s333, 256
        $region52: #{tpu_custom_call.1} parent=39 // pred_fallthru
          _
        // Predicated region
        $region53: #{tpu_custom_call.1} parent=39 // pred_check
          %p341 = pneg %p147
        $region54: #{tpu_custom_call.1} parent=39 // pred_check_branch
          %343 = sbr.rel (%p341) target = $region56
        $region55: #{tpu_custom_call.1} parent=39 // pred_region
          %344 = dma.done [#allocation10], 512
        $region56: #{tpu_custom_call.1} parent=39 // pred_fallthru
          _
        // Predicated region
        $region57: #{tpu_custom_call.1} parent=39 // pred_check
          %p345 = pneg %p168
        $region58: #{tpu_custom_call.1} parent=39 // pred_check_branch
          %347 = sbr.rel (%p345) target = $region60
        $region59: #{tpu_custom_call.1} parent=39 // pred_region
          %348 = dma.done [#allocation10], 16
        $region60: #{tpu_custom_call.1} parent=39 // pred_fallthru
          _
        %s349 = sand.u32 %s57, 1
        %s350 = scalar_lea.sflag [#allocation4], %s349
        %s351 = sand.u32 %s57, 1
        %s352 = smul.addr %s351, 16
        %s353 = scalar_lea.vmem [#allocation3], %s352
        %p354 = pneg %p70
        %p355 = pneg %p67
        %s356 = sand.u32 %s26, 1
        %s357 = scalar_lea.sflag [#allocation7], %s356
        %s358 = sand.u32 %s85, 1
        %s359 = smul.addr %s358, 8
        %s360 = scalar_lea.vmem [#allocation6], %s359
        %p361 = pneg %p98
        %p362 = pneg %p95
        %s363 = sand.u32 %s26, 1
        %s364 = scalar_lea.sflag [#allocation7], %s363
        %s365 = sand.u32 %s113, 1
        %s366 = smul.addr %s365, 16
        %s367 = scalar_lea.vmem [#allocation8], %s366
        %p368 = pneg %p126
        %p369 = pneg %p123
        %p370 = pneg %p147
        %p371 = pneg %p144
        %p372 = pneg %p168
        %p373 = pneg %p165
        %p374 = pneg %p196
        %p375 = pneg %p193
        %s376 = sand.u32 %s183, 1
        %s377 = scalar_lea.sflag [#allocation5], %s376
        %s378 = sand.u32 %s183, 1
        %s379 = smul.addr %s378, 16
        %s380 = scalar_lea.vmem [#allocation12], %s379
        %s381 = smul.u32 2, %s32
        %s382 = smul.u32 2, %s32
        %p383 = scmp.eq.s32.totalorder %s33, 0
        // Predicated region
        $region61: #{tpu_custom_call.1} parent=39 // pred_check
          %p384 = pneg %p383
        $region62: #{tpu_custom_call.1} parent=39 // pred_check_branch
          %386 = sbr.rel (%p384) target = $region64
        $region63: #{tpu_custom_call.1} parent=39 // pred_region
          %vm387 = vcmask 261120
          %388 = vst.msk [vmem:[#allocation2] sm:$0xff] %vm387, 0.0
          %389 = vst.msk [vmem:[#allocation2 + $0x8] sm:$0xff] %vm387, 0.0
        $region64: #{tpu_custom_call.1} parent=39 // pred_fallthru
          _
        %v390 = vld [vmem:[%s318] sm:$0xff]
        %v391 = vld [vmem:[%s318 + $0x8] sm:$0xff]
        %v392 = vld [vmem:[%s327] sm:$0xff]
        %v393 = vld [vmem:[%s336] sm:$0xff]
        %v394 = vld [vmem:[%s336 + $0x8] sm:$0xff]
        %vm395 = vcmask 64512
        %v397 = vsel %vm395, %v390, 0
        %v400 = vsel %vm395, %v391, 0
        %402 = vmatprep.subr.mxu0 0.0
        %403 = vmatpush1.msra.mxu0 %v392
        %404 = vmatprep.subr.mxu0 0.0
        %405 = vmatpush1.msra.mxu0 0.0
        %406 = vmatprep.subr.mxu0 0.0
        %407 = vmatpush1.msra.mxu0 0.0
        %408 = vmatprep.subr.mxu0 0.0
        %409 = vmatpush1.msra.mxu0 0.0
        %410 = vmatprep.subr.mxu0 0.0
        %411 = vmatpush1.msra.mxu0 0.0
        %412 = vmatprep.subr.mxu0 0.0
        %413 = vmatpush1.msra.mxu0 0.0
        %414 = vmatprep.subr.mxu0 0.0
        %415 = vmatpush1.msra.mxu0 0.0
        %416 = vmatprep.subr.mxu0 0.0
        %417 = vmatpush1.msra.mxu0 0.0
        %418 = vmatprep.subr.mxu0 0.0
        %419 = vmatpush1.msra.mxu0 0.0
        %420 = vmatprep.subr.mxu0 0.0
        %421 = vmatpush1.msra.mxu0 0.0
        %422 = vmatprep.subr.mxu0 0.0
        %423 = vmatpush1.msra.mxu0 0.0
        %424 = vmatprep.subr.mxu0 0.0
        %425 = vmatpush1.msra.mxu0 0.0
        %426 = vmatprep.subr.mxu0 0.0
        %427 = vmatpush1.msra.mxu0 0.0
        %428 = vmatprep.subr.mxu0 0.0
        %429 = vmatpush1.msra.mxu0 0.0
        %430 = vmatprep.subr.mxu0 0.0
        %431 = vmatpush1.msra.mxu0 0.0
        %432 = vmatprep.subr.mxu0 0.0
        %433 = vmatpush1.msra.mxu0 0.0
        %434 = vmatprep.subr.mxu0 0.0
        %435 = vmatpush1.msra.mxu0 0.0
        %436 = vmatprep.subr.mxu0 0.0
        %437 = vmatpush1.msra.mxu0 0.0
        %438 = vmatprep.subr.mxu0 0.0
        %439 = vmatpush1.msra.mxu0 0.0
        %440 = vmatprep.subr.mxu0 0.0
        %441 = vmatpush1.msra.mxu0 0.0
        %442 = vmatprep.subr.mxu0 0.0
        %443 = vmatpush1.msra.mxu0 0.0
        %444 = vmatprep.subr.mxu0 0.0
        %445 = vmatpush1.msra.mxu0 0.0
        %446 = vmatprep.subr.mxu0 0.0
        %447 = vmatpush1.msra.mxu0 0.0
        %448 = vmatprep.subr.mxu0 0.0
        %449 = vmatpush1.msra.mxu0 0.0
        %450 = vmatprep.subr.mxu0 0.0
        %451 = vmatpush1.msra.mxu0 0.0
        %452 = vmatprep.subr.mxu0 0.0
        %453 = vmatpush1.msra.mxu0 0.0
        %454 = vmatprep.subr.mxu0 0.0
        %455 = vmatpush1.msra.mxu0 0.0
        %456 = vmatprep.subr.mxu0 0.0
        %457 = vmatpush1.msra.mxu0 0.0
        %458 = vmatprep.subr.mxu0 0.0
        %459 = vmatpush1.msra.mxu0 0.0
        %460 = vmatprep.subr.mxu0 0.0
        %461 = vmatpush1.msra.mxu0 0.0
        %462 = vmatprep.subr.mxu0 0.0
        %463 = vmatpush1.msra.mxu0 0.0
        %464 = vmatprep.subr.mxu0 0.0
        %465 = vmatpush1.msra.mxu0 0.0
        %466 = vmatprep.mubr.f32.mxu0 0.0
        %467 = vmatmul.mubr.f32.gmra.mrb[0].mxu0 %v397
        %v468 = vpop.f32.mrb[0].mxu0
        %v469 = vadd.f32 0.0, %v468
        %v470 = vpop.f32.mrb[0].mxu0
        %471 = vmatprep.mubr.f32.mxu0 0.0
        %472 = vmatmul.mubr.f32.gmra.mrb[0].mxu0 %v400
        %v473 = vpop.f32.mrb[0].mxu0
        %v474 = vadd.f32 0.0, %v473
        %v475 = vpop.f32.mrb[0].mxu0
        %476 = vdwg.mxu0
        %vm477 = vcmask 130048
        %v478 = vsel %vm477, %v469, -inf
        %479 = vmax.xlane.f32.xlu0 %v478
        %v480 = vpop.xlane.xlu0 %479
        %v481 = vsel %vm477, %v474, -inf
        %482 = vmax.xlane.f32.xlu0 %v481
        %v483 = vpop.xlane.xlu0 %482
        %v484 = vsub.f32 %v469, %v480
        %v485 = vsub.f32 %v474, %v483
        %v486 = vmul.f32 %v484, 1.442695
        %v487 = vpow.pop %v486
        %v488 = vmul.f32 %v485, 1.442695
        %v489 = vpow.pop %v488
        %v490 = vsel %vm477, %v487, 0.0
        %491 = vadd.xlane.f32.xlu0 %v490
        %v492 = vpop.xlane.xlu0 %491
        %v493 = vsel %vm477, %v489, 0.0
        %494 = vadd.xlane.f32.xlu0 %v493
        %v495 = vpop.xlane.xlu0 %494
        %v496 = vrcp.pop %v492
        %v497 = vrcp.pop %v495
        %v498 = vmul.f32 %v487, %v496
        %v499 = vmul.f32 %v489, %v497
        %v501 = vsel %vm477, %v498, 0
        %v504 = vsel %vm477, %v499, 0
        %506 = vmatprep.subr.mxu0 0.0
        %507 = vmatpush1.msra.mxu0 %v393
        %508 = vmatprep.subr.mxu0 0.0
        %509 = vmatpush1.msra.mxu0 %v394
        %510 = vmatprep.subr.mxu0 0.0
        %511 = vmatpush1.msra.mxu0 0.0
        %512 = vmatprep.subr.mxu0 0.0
        %513 = vmatpush1.msra.mxu0 0.0
        %514 = vmatprep.subr.mxu0 0.0
        %515 = vmatpush1.msra.mxu0 0.0
        %516 = vmatprep.subr.mxu0 0.0
        %517 = vmatpush1.msra.mxu0 0.0
        %518 = vmatprep.subr.mxu0 0.0
        %519 = vmatpush1.msra.mxu0 0.0
        %520 = vmatprep.subr.mxu0 0.0
        %521 = vmatpush1.msra.mxu0 0.0
        %522 = vmatprep.subr.mxu0 0.0
        %523 = vmatpush1.msra.mxu0 0.0
        %524 = vmatprep.subr.mxu0 0.0
        %525 = vmatpush1.msra.mxu0 0.0
        %526 = vmatprep.subr.mxu0 0.0
        %527 = vmatpush1.msra.mxu0 0.0
        %528 = vmatprep.subr.mxu0 0.0
        %529 = vmatpush1.msra.mxu0 0.0
        %530 = vmatprep.subr.mxu0 0.0
        %531 = vmatpush1.msra.mxu0 0.0
        %532 = vmatprep.subr.mxu0 0.0
        %533 = vmatpush1.msra.mxu0 0.0
        %534 = vmatprep.subr.mxu0 0.0
        %535 = vmatpush1.msra.mxu0 0.0
        %536 = vmatprep.subr.mxu0 0.0
        %537 = vmatpush1.msra.mxu0 0.0
        %538 = vmatprep.subr.mxu0 0.0
        %539 = vmatpush1.msra.mxu0 0.0
        %540 = vmatprep.subr.mxu0 0.0
        %541 = vmatpush1.msra.mxu0 0.0
        %542 = vmatprep.subr.mxu0 0.0
        %543 = vmatpush1.msra.mxu0 0.0
        %544 = vmatprep.subr.mxu0 0.0
        %545 = vmatpush1.msra.mxu0 0.0
        %546 = vmatprep.subr.mxu0 0.0
        %547 = vmatpush1.msra.mxu0 0.0
        %548 = vmatprep.subr.mxu0 0.0
        %549 = vmatpush1.msra.mxu0 0.0
        %550 = vmatprep.subr.mxu0 0.0
        %551 = vmatpush1.msra.mxu0 0.0
        %552 = vmatprep.subr.mxu0 0.0
        %553 = vmatpush1.msra.mxu0 0.0
        %554 = vmatprep.subr.mxu0 0.0
        %555 = vmatpush1.msra.mxu0 0.0
        %556 = vmatprep.subr.mxu0 0.0
        %557 = vmatpush1.msra.mxu0 0.0
        %558 = vmatprep.subr.mxu0 0.0
        %559 = vmatpush1.msra.mxu0 0.0
        %560 = vmatprep.subr.mxu0 0.0
        %561 = vmatpush1.msra.mxu0 0.0
        %562 = vmatprep.subr.mxu0 0.0
        %563 = vmatpush1.msra.mxu0 0.0
        %564 = vmatprep.subr.mxu0 0.0
        %565 = vmatpush1.msra.mxu0 0.0
        %566 = vmatprep.subr.mxu0 0.0
        %567 = vmatpush1.msra.mxu0 0.0
        %568 = vmatprep.subr.mxu0 0.0
        %569 = vmatpush1.msra.mxu0 0.0
        %570 = vmatprep.mubr.f32.mxu0 0.0
        %571 = vmatmul.mubr.f32.gmra.mrb[0].mxu0 %v501
        %v572 = vpop.f32.mrb[0].mxu0
        %v573 = vadd.f32 0.0, %v572
        %v574 = vpop.f32.mrb[0].mxu0
        %575 = vmatprep.mubr.f32.mxu0 0.0
        %576 = vmatmul.mubr.f32.gmra.mrb[0].mxu0 %v504
        %v577 = vpop.f32.mrb[0].mxu0
        %v578 = vadd.f32 0.0, %v577
        %v579 = vpop.f32.mrb[0].mxu0
        %580 = vdwg.mxu0
        %v581 = vld [vmem:[#allocation2] sm:$0xff]
        %v582 = vld [vmem:[#allocation2 + $0x8] sm:$0xff]
        %s583 = smul.u32 %s33, 8
        %s584 = scalar_lea.vmem [#allocation9], %s583
        %v585 = vld [vmem:[%s584] sm:$0xff]
        %v587 = vsel %vm395, %v573, 0
        %v590 = vsel %vm395, %v578, 0
        %592 = vmatprep.subr.mxu0 0.0
        %593 = vmatpush1.msra.mxu0 %v585
        %594 = vmatprep.subr.mxu0 0.0
        %595 = vmatpush1.msra.mxu0 0.0
        %596 = vmatprep.subr.mxu0 0.0
        %597 = vmatpush1.msra.mxu0 0.0
        %598 = vmatprep.subr.mxu0 0.0
        %599 = vmatpush1.msra.mxu0 0.0
        %600 = vmatprep.subr.mxu0 0.0
        %601 = vmatpush1.msra.mxu0 0.0
        %602 = vmatprep.subr.mxu0 0.0
        %603 = vmatpush1.msra.mxu0 0.0
        %604 = vmatprep.subr.mxu0 0.0
        %605 = vmatpush1.msra.mxu0 0.0
        %606 = vmatprep.subr.mxu0 0.0
        %607 = vmatpush1.msra.mxu0 0.0
        %608 = vmatprep.subr.mxu0 0.0
        %609 = vmatpush1.msra.mxu0 0.0
        %610 = vmatprep.subr.mxu0 0.0
        %611 = vmatpush1.msra.mxu0 0.0
        %612 = vmatprep.subr.mxu0 0.0
        %613 = vmatpush1.msra.mxu0 0.0
        %614 = vmatprep.subr.mxu0 0.0
        %615 = vmatpush1.msra.mxu0 0.0
        %616 = vmatprep.subr.mxu0 0.0
        %617 = vmatpush1.msra.mxu0 0.0
        %618 = vmatprep.subr.mxu0 0.0
        %619 = vmatpush1.msra.mxu0 0.0
        %620 = vmatprep.subr.mxu0 0.0
        %621 = vmatpush1.msra.mxu0 0.0
        %622 = vmatprep.subr.mxu0 0.0
        %623 = vmatpush1.msra.mxu0 0.0
        %624 = vmatprep.subr.mxu0 0.0
        %625 = vmatpush1.msra.mxu0 0.0
        %626 = vmatprep.subr.mxu0 0.0
        %627 = vmatpush1.msra.mxu0 0.0
        %628 = vmatprep.subr.mxu0 0.0
        %629 = vmatpush1.msra.mxu0 0.0
        %630 = vmatprep.subr.mxu0 0.0
        %631 = vmatpush1.msra.mxu0 0.0
        %632 = vmatprep.subr.mxu0 0.0
        %633 = vmatpush1.msra.mxu0 0.0
        %634 = vmatprep.subr.mxu0 0.0
        %635 = vmatpush1.msra.mxu0 0.0
        %636 = vmatprep.subr.mxu0 0.0
        %637 = vmatpush1.msra.mxu0 0.0
        %638 = vmatprep.subr.mxu0 0.0
        %639 = vmatpush1.msra.mxu0 0.0
        %640 = vmatprep.subr.mxu0 0.0
        %641 = vmatpush1.msra.mxu0 0.0
        %642 = vmatprep.subr.mxu0 0.0
        %643 = vmatpush1.msra.mxu0 0.0
        %644 = vmatprep.subr.mxu0 0.0
        %645 = vmatpush1.msra.mxu0 0.0
        %646 = vmatprep.subr.mxu0 0.0
        %647 = vmatpush1.msra.mxu0 0.0
        %648 = vmatprep.subr.mxu0 0.0
        %649 = vmatpush1.msra.mxu0 0.0
        %650 = vmatprep.subr.mxu0 0.0
        %651 = vmatpush1.msra.mxu0 0.0
        %652 = vmatprep.subr.mxu0 0.0
        %653 = vmatpush1.msra.mxu0 0.0
        %654 = vmatprep.subr.mxu0 0.0
        %655 = vmatpush1.msra.mxu0 0.0
        %656 = vmatprep.mubr.f32.mxu0 0.0
        %657 = vmatmul.mubr.f32.gmra.mrb[0].mxu0 %v587
        %v658 = vpop.f32.mrb[0].mxu0
        %v659 = vadd.f32 0.0, %v658
        %v660 = vpop.f32.mrb[0].mxu0
        %661 = vmatprep.mubr.f32.mxu0 0.0
        %662 = vmatmul.mubr.f32.gmra.mrb[0].mxu0 %v590
        %v663 = vpop.f32.mrb[0].mxu0
        %v664 = vadd.f32 0.0, %v663
        %v665 = vpop.f32.mrb[0].mxu0
        %666 = vdwg.mxu0
        %v667 = vadd.f32 %v581, %v659
        %v668 = vadd.f32 %v582, %v664
        %vm669 = vcmask 261120
        %670 = vst.msk [vmem:[#allocation2] sm:$0xff] %vm669, %v667
        %671 = vst.msk [vmem:[#allocation2 + $0x8] sm:$0xff] %vm669, %v668
        %p672 = scmp.eq.s32.totalorder %s33, 3
        // Predicated region
        $region65: #{tpu_custom_call.1} parent=39 // pred_check
          %p673 = pneg %p672
        $region66: #{tpu_custom_call.1} parent=39 // pred_check_branch
          %675 = sbr.rel (%p673) target = $region68
        $region67: #{tpu_custom_call.1} parent=39 // pred_region
          %v676 = vld [vmem:[#allocation2] sm:$0xff]
          %v677 = vld [vmem:[#allocation2 + $0x8] sm:$0xff]
          %v678 = vld [vmem:[#allocation11] sm:$0x1]
          %v680 = vlaneseq
          %v681 = vshrl.u32 %v680, 7
          %v682 = vsub.s32 0, %v681
          %v683 = vrot.slane %v678, %v682
          %v685 = vadd.f32 %v676, %v683
          %v686 = vadd.f32 %v677, %v683
          %687 = vst.msk [vmem:[%s380] sm:$0xff] %vm669, %v685
          %688 = vst.msk [vmem:[%s380 + $0x8] sm:$0xff] %vm669, %v686
        $region68: #{tpu_custom_call.1} parent=39 // pred_fallthru
          _
        %s689 = sand.u32 %s183, 1
        %s690 = scalar_lea.sflag [#allocation5], %s689
        %s691 = sand.u32 %s183, 1
        %s692 = smul.addr %s691, 16
        %s693 = scalar_lea.vmem [#allocation12], %s692
        // Predicated region
        $region69: #{tpu_custom_call.1} parent=39 // pred_check
          %p694 = pneg %p193
        $region70: #{tpu_custom_call.1} parent=39 // pred_check_branch
          %696 = sbr.rel (%p694) target = $region72
        $region71: #{tpu_custom_call.1} parent=39 // pred_region
          %s697 = smul.u32 2, %s32
          %s699 = ssub.s32 256, 256
          %700 = vsyncadd %s690, %s699
          %s701 = smul.addr %s31, 2
          %s702 = sadd.s32 %s697, %s701
          %s703 = smul.addr %s702, 128
          %s704 = scalar_lea.hbm %s5, %s703
          %s705 = sshll.u32 %s693, 4
          %s706 = int_to_ptr.vmem [resolvable:$true] %s705
          %711 = dma.vmem_to_hbm [thread:$0]  %s706, 256, %s704, %s690, 128, 128, 8
        $region72: #{tpu_custom_call.1} parent=39 // pred_fallthru
          _
      $region40: #{tpu_custom_call.1} parent=5 // pred_fallthru
        _
      %p712 = scmp.le.s32.totalorder 2, %s21
      // Predicated region
      $region73: #{tpu_custom_call.1} parent=5 // pred_check
        %p713 = pneg %p712
      $region74: #{tpu_custom_call.1} parent=5 // pred_check_branch
        %715 = sbr.rel (%p713) target = $region76
      $region75: #{tpu_custom_call.1} parent=5 // pred_region
        %s716 = ssub.s32 %s21, 2
        // Predicated region
        $region77: #{tpu_custom_call.1} parent=75 // pred_check
          %p717 = pneg %p199
        $region78: #{tpu_custom_call.1} parent=75 // pred_check_branch
          %719 = sbr.rel (%p717) target = $region80
        $region79: #{tpu_custom_call.1} parent=75 // pred_region
          %s720 = sand.u32 %s184, 1
          %s721 = scalar_lea.sflag [#allocation5], %s720
          %s722 = sand.u32 %s184, 1
          %s723 = smul.addr %s722, 16
          %s724 = scalar_lea.vmem [#allocation12], %s723
          %725 = dma.done %s721, 256
        $region80: #{tpu_custom_call.1} parent=75 // pred_fallthru
          _
      $region76: #{tpu_custom_call.1} parent=5 // pred_fallthru
        _
    $region6: #{tpu_custom_call.1} parent=1 // loop_footer
      %s25 = sadd.s32 1, %s21
    $region7: #{tpu_custom_call.1} parent=1 // loop_footer_branch
      %20 = sbr.rel target = $region3
    $region8: #{tpu_custom_call.1} parent=1 // loop_exit
      _
    %726 = vsyncpa [#allocation4], 1
    %s727 = scalar_lea.sflag [#allocation4], 1
    %728 = vsyncpa %s727, 1
    %729 = vsyncpa [#allocation7], 1
    %s730 = scalar_lea.sflag [#allocation7], 1
    %731 = vsyncpa %s730, 1
    %732 = vsyncpa [#allocation10], 1
    %733 = vsyncpa [#allocation5], 1
    %s734 = scalar_lea.sflag [#allocation5], 1
    %735 = vsyncpa %s734, 1

</llo_original>
